<compile_context>
chip_gen: v5e
topology: v5e:2x2
jax: 0.10.0
libtpu: 0.0.40
codegen_flags: <defaults>
</compile_context>

<pallas_src>
import functools

import jax
import jax.numpy as jnp
from jax import lax
from jax.experimental import pallas as pl
from jax.experimental.pallas import tpu as pltpu


def _ls_loss_kernel(y_ref, logits_ref, partial_ref, *, ls, vocab, pad, n_rows, tile_n):
    i = pl.program_id(0)

    logits = logits_ref[...].astype(jnp.float32)              # (TN, V)
    y = y_ref[...]                                             # (TN, 1) int32

    # log-softmax pieces along the vocab (lane) axis.
    m = jnp.max(logits, axis=-1, keepdims=True)                # (TN, 1)
    shifted = logits - m                                       # (TN, V)

    # Lane-axis reductions go through the (otherwise idle) MXU: (TN,V) @ (V,1).
    ones_v = jnp.ones((vocab, 1), dtype=jnp.float32)
    sum_exp = jnp.dot(jnp.exp(shifted), ones_v,
                      precision=lax.Precision.HIGHEST,
                      preferred_element_type=jnp.float32)      # (TN, 1)
    lse = jnp.log(sum_exp)                                     # (TN, 1)

    # Fused smoothed weights: w[j] = (1-ls) if j == y else ls/(V-1); sum_j w_j == 1
    #   => -(smooth * logp).sum(-1) = lse - sum_j w_j * shifted_j
    # (the pad column receives smoothing mass too, exactly like the reference module).
    c = ls / (vocab - 1)
    col = jax.lax.broadcasted_iota(jnp.int32, shifted.shape, 1)
    w = jnp.where(col == y, 1.0 - ls, c)                       # (TN, V)
    wsum = jnp.dot(w * shifted, ones_v,
                   precision=lax.Precision.HIGHEST,
                   preferred_element_type=jnp.float32)         # (TN, 1)
    per_row = lse - wsum                                       # (TN, 1)

    # Row mask: non-pad AND (ragged last tile only) inside the real row range.
    keep = y != pad                                            # (TN, 1) bool
    if (n_rows % tile_n) != 0:                                 # static Python bool
        row = jax.lax.broadcasted_iota(jnp.int32, (tile_n, 1), 0) + i * tile_n
        keep = jnp.logical_and(keep, row < n_rows)

    # where (not multiply): OOB rows may carry NaN/Inf garbage -> discard, don't scale.
    loss_sum = jnp.sum(jnp.where(keep, per_row, 0.0), axis=0, keepdims=True)  # (1,1)
    cnt = jnp.sum(jnp.where(keep, 1.0, 0.0), axis=0, keepdims=True)           # (1,1)

    # Lane-dense partial output: lane 0 = loss sum, lane 1 = non-pad count.
    lane = jax.lax.broadcasted_iota(jnp.int32, (1, 128), 1)
    partial_ref[...] = jnp.where(lane == 0, loss_sum,
                                 jnp.where(lane == 1, cnt, 0.0))


def _round_up(a, b):
    return ((a + b - 1) // b) * b


def label_smoothing_onehot_loss(out, y, *, ls, vocab_size, pad, tile_n=None):
    """Pallas equivalent of LabelSmoothing_Onehot.forward(out, y)."""
    logits = out.reshape(-1, vocab_size)          # keep native dtype (bf16 stays bf16)
    labels = y.reshape(-1, 1).astype(jnp.int32)
    n = logits.shape[0]

    itemsize = jnp.dtype(logits.dtype).itemsize
    sublane = {4: 8, 2: 16, 1: 32}.get(itemsize, 8)
    n_aligned = _round_up(n, sublane)

    # ---- VMEM-aware tile sizing: budget peak LIVE bytes, not just the input block.
    # per row: double-buffered native logits block + ~K full-width f32/int32
    # temporaries (f32 cast, shifted, exp, iota/weights, product) + the
    # lane-padded (tile_n,128) int32 labels block (double-buffered).
    K_F32_TEMPS = 5
    per_row_bytes = (2 * vocab_size * itemsize
                     + K_F32_TEMPS * vocab_size * 4
                     + 2 * 128 * 4)
    VMEM_BUDGET = 28 * 1024 * 1024          # fits v5e/v6e (128 MiB) and v7x (64 MiB/TC)
    TARGET_LOGIT_BYTES = 2 * 1024 * 1024    # ~2 MiB blocks already reach ~85% HBM roofline

    if tile_n is None:
        tile_n = VMEM_BUDGET // per_row_bytes
        tile_n = min(tile_n,
                     max(sublane, TARGET_LOGIT_BYTES // (vocab_size * itemsize)),
                     4096)
        # megacore / pipelining: keep >= ~4 grid steps when there is enough work,
        # but never shrink below 512 rows just to split.
        if n_aligned > 2 * 512:
            tile_n = min(tile_n, max(_round_up(-(-n_aligned // 4), sublane), 512))
    tile_n = max(sublane, (int(tile_n) // sublane) * sublane)
    tile_n = min(tile_n, n_aligned)

    num_tiles = pl.cdiv(n, tile_n)

    # Explicit scoped-VMEM limit derived from the chosen tile's peak live bytes.
    peak_bytes = tile_n * per_row_bytes + 128 * 4
    vmem_limit = int(max(min(2 * peak_bytes, 40 * 1024 * 1024),
                         peak_bytes + 4 * 1024 * 1024,
                         24 * 1024 * 1024))

    kernel = functools.partial(_ls_loss_kernel, ls=float(ls), vocab=int(vocab_size),
                               pad=int(pad), n_rows=int(n), tile_n=int(tile_n))

    cost = pl.CostEstimate(
        flops=int(10 * n * vocab_size),
        transcendentals=int(n * vocab_size),
        bytes_accessed=int(n * vocab_size * itemsize + n * 4 + num_tiles * 128 * 4),
    )

    partials = pl.pallas_call(
        kernel,
        out_shape=jax.ShapeDtypeStruct((num_tiles, 128), jnp.float32),
        grid_spec=pltpu.PrefetchScalarGridSpec(
            num_scalar_prefetch=0,
            grid=(num_tiles,),
            in_specs=[
                pl.BlockSpec((tile_n, 1), lambda i: (i, 0)),            # labels
                pl.BlockSpec((tile_n, vocab_size), lambda i: (i, 0)),   # logits
            ],
            out_specs=pl.BlockSpec((1, 128), lambda i: (i, 0)),
        ),
        compiler_params=pltpu.CompilerParams(
            dimension_semantics=("parallel",),
            vmem_limit_bytes=vmem_limit,
        ),
        cost_estimate=cost,
    )(labels, logits)

    loss_sum = jnp.sum(partials[:, 0])
    word = jnp.sum(partials[:, 1])
    # Matches PyTorch: divide by non-pad token count (NaN if every token is pad).
    return loss_sum / word


def _reference_loss(out, y, *, ls, vocab_size, pad):
    logits = out.reshape(-1, vocab_size).astype(jnp.float32)
    labels = y.reshape(-1)
    logp = jax.nn.log_softmax(logits, axis=-1)
    one_hot = jax.nn.one_hot(labels, vocab_size, dtype=jnp.float32)
    smooth = one_hot * (1.0 - ls) + (1.0 - one_hot) * (ls / (vocab_size - 1))
    mask = (labels != pad).astype(jnp.float32)
    per_row = -jnp.sum(smooth * logp, axis=-1)
    return jnp.sum(per_row * mask) / jnp.sum(mask)


if __name__ == "__main__":
    # Synthetic config (deterministic, in-script).
    class Cfg:
        ls = 0.1
        vocab_size = 128
        pad = 0

    batch, seq = 2, 23          # n = 46 tokens (exercises the ragged last tile)
    key = jax.random.PRNGKey(0)
    k1, k2 = jax.random.split(key)

    out = jax.random.normal(k1, (batch, seq, Cfg.vocab_size), dtype=jnp.float32)
    y = jax.random.randint(k2, (batch, seq), minval=1, maxval=Cfg.vocab_size,
                           dtype=jnp.int32)
    # force a couple of pad tokens so the mask path is exercised
    y = y.at[0, 0].set(Cfg.pad)
    y = y.at[1, 3].set(Cfg.pad)

    ref = _reference_loss(out, y, ls=Cfg.ls, vocab_size=Cfg.vocab_size, pad=Cfg.pad)

    # 1) default (VMEM-budgeted) tile -> single grid step at this size
    loss = label_smoothing_onehot_loss(out, y, ls=Cfg.ls,
                                       vocab_size=Cfg.vocab_size, pad=Cfg.pad)
    loss = jax.block_until_ready(loss)
    assert jnp.allclose(loss, ref, rtol=1e-5, atol=1e-5), (loss, ref)

    # 2) forced small tile -> multi-tile grid with a ragged last tile
    loss_tiled = label_smoothing_onehot_loss(out, y, ls=Cfg.ls,
                                             vocab_size=Cfg.vocab_size,
                                             pad=Cfg.pad, tile_n=16)
    loss_tiled = jax.block_until_ready(loss_tiled)
    assert jnp.allclose(loss_tiled, ref, rtol=1e-5, atol=1e-5), (loss_tiled, ref)

    # 3) bf16 logits stay bf16 in HBM; kernel casts to f32 internally
    out_bf16 = out.astype(jnp.bfloat16)
    ref_bf16 = _reference_loss(out_bf16, y, ls=Cfg.ls,
                               vocab_size=Cfg.vocab_size, pad=Cfg.pad)
    loss_bf16 = label_smoothing_onehot_loss(out_bf16, y, ls=Cfg.ls,
                                            vocab_size=Cfg.vocab_size, pad=Cfg.pad)
    loss_bf16 = jax.block_until_ready(loss_bf16)
    assert jnp.allclose(loss_bf16, ref_bf16, rtol=1e-4, atol=1e-4), (loss_bf16, ref_bf16)

    print("KERNEL_OK")
</pallas_src>

<mosaic_0001>
module attributes {stable_mosaic.version = 11 : i64} {
  func.func @_ls_loss_kernel(%arg0: i32, %arg1: memref<48x1xi32, #tpu.memory_space<vmem>>, %arg2: memref<48x128xf32, #tpu.memory_space<vmem>>, %arg3: memref<1x128xf32, #tpu.memory_space<vmem>>) attributes {dimension_semantics = [#tpu.dimension_semantics<parallel>], iteration_bounds = array<i64: 1>, scalar_prefetch = 0 : i64, scratch_operands = 0 : i64, tpu.core_type = #tpu.core_type<tc>, window_params = [{transform_indices = @transform_0, window_bounds = array<i64: 48, 1>}, {transform_indices = @transform_1, window_bounds = array<i64: 48, 128>}, {transform_indices = @transform_2, window_bounds = array<i64: 1, 128>}]} {
    %c0 = arith.constant 0 : index
    %c0_0 = arith.constant 0 : index
    %0 = vector.load %arg2[%c0, %c0_0] : memref<48x128xf32, #tpu.memory_space<vmem>>, vector<48x128xf32>
    %c0_1 = arith.constant 0 : index
    %c0_2 = arith.constant 0 : index
    %1 = vector.load %arg1[%c0_1, %c0_2] : memref<48x1xi32, #tpu.memory_space<vmem>>, vector<48x1xi32>
    %cst = arith.constant dense<0xFF800000> : vector<48xf32>
    %2 = vector.multi_reduction <maximumf>, %0, %cst [1] : vector<48x128xf32> to vector<48xf32>
    %3 = vector.shape_cast %2 : vector<48xf32> to vector<48x1xf32>
    %4 = vector.broadcast %3 : vector<48x1xf32> to vector<48x128xf32>
    %5 = arith.subf %0, %4 : vector<48x128xf32>
    %cst_3 = arith.constant 1.000000e+00 : f32
    %6 = vector.broadcast %cst_3 : f32 to vector<128x1xf32>
    %7 = math.exp %5 : vector<48x128xf32>
    %cst_4 = arith.constant dense<0.000000e+00> : vector<48x1xf32>
    %8 = tpu.matmul %7, %6, %cst_4 {dimension_numbers = #tpu.dot_dimension_numbers<[1], [0], [0], [1], [0, 0, 1, 1], [], []>, precision = #tpu.contract_precision<fp32>} : vector<48x128xf32>, vector<128x1xf32>, vector<48x1xf32> -> vector<48x1xf32>
    %9 = math.log %8 : vector<48x1xf32>
    %10 = tpu.iota {dimensions = array<i32: 1>} : vector<48x128xi32>
    %11 = vector.broadcast %1 : vector<48x1xi32> to vector<48x128xi32>
    %12 = arith.cmpi eq, %10, %11 : vector<48x128xi32>
    %cst_5 = arith.constant 0.899999976 : f32
    %cst_6 = arith.constant 7.87401571E-4 : f32
    %13 = vector.broadcast %cst_5 : f32 to vector<48x128xf32>
    %14 = vector.broadcast %cst_6 : f32 to vector<48x128xf32>
    %15 = arith.select %12, %13, %14 : vector<48x128xi1>, vector<48x128xf32>
    %16 = arith.mulf %15, %5 : vector<48x128xf32>
    %cst_7 = arith.constant dense<0.000000e+00> : vector<48x1xf32>
    %17 = tpu.matmul %16, %6, %cst_7 {dimension_numbers = #tpu.dot_dimension_numbers<[1], [0], [0], [1], [0, 0, 1, 1], [], []>, precision = #tpu.contract_precision<fp32>} : vector<48x128xf32>, vector<128x1xf32>, vector<48x1xf32> -> vector<48x1xf32>
    %18 = arith.subf %9, %17 : vector<48x1xf32>
    %c0_i32 = arith.constant 0 : i32
    %19 = vector.broadcast %c0_i32 : i32 to vector<48x1xi32>
    %20 = arith.cmpi ne, %1, %19 : vector<48x1xi32>
    %21 = tpu.iota {dimensions = array<i32: 0>} : vector<48x1xi32>
    %c48_i32 = arith.constant 48 : i32
    %22 = arith.muli %arg0, %c48_i32 : i32
    %23 = vector.broadcast %22 : i32 to vector<48x1xi32>
    %24 = arith.addi %21, %23 : vector<48x1xi32>
    %c46_i32 = arith.constant 46 : i32
    %25 = vector.broadcast %c46_i32 : i32 to vector<48x1xi32>
    %26 = arith.cmpi slt, %24, %25 : vector<48x1xi32>
    %27 = arith.andi %20, %26 : vector<48x1xi1>
    %cst_8 = arith.constant 0.000000e+00 : f32
    %28 = vector.broadcast %cst_8 : f32 to vector<48x1xf32>
    %29 = arith.select %27, %18, %28 : vector<48x1xi1>, vector<48x1xf32>
    %cst_9 = arith.constant dense<0.000000e+00> : vector<1xf32>
    %30 = vector.multi_reduction <add>, %29, %cst_9 [0] : vector<48x1xf32> to vector<1xf32>
    %31 = vector.shape_cast %30 : vector<1xf32> to vector<1x1xf32>
    %cst_10 = arith.constant 1.000000e+00 : f32
    %cst_11 = arith.constant 0.000000e+00 : f32
    %32 = vector.broadcast %cst_10 : f32 to vector<48x1xf32>
    %33 = vector.broadcast %cst_11 : f32 to vector<48x1xf32>
    %34 = arith.select %27, %32, %33 : vector<48x1xi1>, vector<48x1xf32>
    %cst_12 = arith.constant dense<0.000000e+00> : vector<1xf32>
    %35 = vector.multi_reduction <add>, %34, %cst_12 [0] : vector<48x1xf32> to vector<1xf32>
    %36 = vector.shape_cast %35 : vector<1xf32> to vector<1x1xf32>
    %37 = tpu.iota {dimensions = array<i32: 1>} : vector<1x128xi32>
    %c0_i32_13 = arith.constant 0 : i32
    %38 = vector.broadcast %c0_i32_13 : i32 to vector<1x128xi32>
    %39 = arith.cmpi eq, %37, %38 : vector<1x128xi32>
    %c1_i32 = arith.constant 1 : i32
    %40 = vector.broadcast %c1_i32 : i32 to vector<1x128xi32>
    %41 = arith.cmpi eq, %37, %40 : vector<1x128xi32>
    %cst_14 = arith.constant 0.000000e+00 : f32
    %42 = vector.shape_cast %36 : vector<1x1xf32> to vector<1x1xf32>
    %43 = vector.broadcast %42 : vector<1x1xf32> to vector<1x128xf32>
    %44 = vector.broadcast %cst_14 : f32 to vector<1x128xf32>
    %45 = arith.select %41, %43, %44 : vector<1x128xi1>, vector<1x128xf32>
    %46 = vector.shape_cast %31 : vector<1x1xf32> to vector<1x1xf32>
    %47 = vector.broadcast %46 : vector<1x1xf32> to vector<1x128xf32>
    %48 = arith.select %39, %47, %45 : vector<1x128xi1>, vector<1x128xf32>
    %c0_15 = arith.constant 0 : index
    %c0_16 = arith.constant 0 : index
    %49 = vector.load %arg3[%c0_15, %c0_16] : memref<1x128xf32, #tpu.memory_space<vmem>>, vector<1x128xf32>
    tpu.vector_store %arg3[%c0_15, %c0_16], %48 {strides = array<i32>} : memref<1x128xf32, #tpu.memory_space<vmem>>, vector<1x128xf32>,
    return
  }
  func.func @transform_0(%arg0: i32) -> (i32, i32) {
    %c0_i32 = arith.constant 0 : i32
    %c0_i32_0 = arith.constant 0 : i32
    return %arg0, %c0_i32 : i32, i32
  }
  func.func @transform_1(%arg0: i32) -> (i32, i32) {
    %c0_i32 = arith.constant 0 : i32
    %c0_i32_0 = arith.constant 0 : i32
    return %arg0, %c0_i32 : i32, i32
  }
  func.func @transform_2(%arg0: i32) -> (i32, i32) {
    %c0_i32 = arith.constant 0 : i32
    %c0_i32_0 = arith.constant 0 : i32
    return %arg0, %c0_i32 : i32, i32
  }
}

</mosaic_0001>

<llo_original>
// kernel: tpu_custom_call.1
$region0: #{tpu_custom_call.1}
  #allocation0 [shape = 'u32[]', space=smem, size = 0x4, offset = 0x4, fixed_abs, tag = 'smem constant byte address 0x4 - core index']
  #allocation1 [shape = 'u32[72,128]{1,0:T(1,128)}', space=vmem, size = 0x9000, scoped, tag = 'internal scratch']
  %s0 = inlined_call_operand.vmem [shape: s32[46,1], index: 0, kind: input, shape index: {}]
  %s1 = inlined_call_operand.vmem [shape: f32[46,128], index: 1, kind: input, shape index: {}]
  %s2 = inlined_call_operand.hbm [shape: f32[1,128], index: 2, kind: output, shape index: {}]
  %s3 = sld [smem:[#allocation0]]
  $region18: #{tpu_custom_call.1} parent=0
    _
  %s5 = ssub.s32 1, %s3
  %s6 = scalar_select 0, %s5, %s3
  $region1: #{tpu_custom_call.1} parent=0
    #allocation2 [shape = 'u8[512]{0}', space=vmem, size = 0x400, scoped, tag = 'output window, operand 0, single buffered']
    #allocation3 [shape = 's32[1]{0}', space=sflag, size = 0x4, scoped, tag = 'scoped memory for tpu_custom_call.1']
    %7 = vsyncpa [#allocation3], 0
    // Predicated region
    $region2: #{tpu_custom_call.1} parent=1 // pred_check
      _
    $region3: #{tpu_custom_call.1} parent=1 // pred_check_branch
      %9 = sbr.rel (0) target = $region5
    $region4: #{tpu_custom_call.1} parent=1 // pred_region
      _
    $region5: #{tpu_custom_call.1} parent=1 // pred_fallthru
      _
    // Predicated region
    $region6: #{tpu_custom_call.1} parent=1 // pred_check
      _
    $region7: #{tpu_custom_call.1} parent=1 // pred_check_branch
      %11 = sbr.rel (0) target = $region9
    $region8: #{tpu_custom_call.1} parent=1 // pred_region
      _
    $region9: #{tpu_custom_call.1} parent=1 // pred_fallthru
      _
    %v12 = vld [vmem:[%s1] sm:$0xff]
    %v13 = vld [vmem:[%s1 + $0x8] sm:$0xff]
    %v14 = vld [vmem:[%s1 + $0x10] sm:$0xff]
    %v15 = vld [vmem:[%s1 + $0x18] sm:$0xff]
    %v16 = vld [vmem:[%s1 + $0x20] sm:$0xff]
    %v17 = vld [vmem:[%s1 + $0x28] sm:$0xff]
    %v18 = vld [vmem:[%s0] sm:$0xff]
    %v19 = vld [vmem:[%s0 + $0x8] sm:$0xff]
    %v20 = vld [vmem:[%s0 + $0x10] sm:$0xff]
    %v21 = vld [vmem:[%s0 + $0x18] sm:$0xff]
    %v22 = vld [vmem:[%s0 + $0x20] sm:$0xff]
    %v23 = vld [vmem:[%s0 + $0x28] sm:$0xff]
    %24 = vmax.xlane.f32.xlu0 %v12
    %v25 = vpop.xlane.xlu0 %24
    %26 = vmax.xlane.f32.xlu0 %v13
    %v27 = vpop.xlane.xlu0 %26
    %28 = vmax.xlane.f32.xlu0 %v14
    %v29 = vpop.xlane.xlu0 %28
    %30 = vmax.xlane.f32.xlu0 %v15
    %v31 = vpop.xlane.xlu0 %30
    %32 = vmax.xlane.f32.xlu0 %v16
    %v33 = vpop.xlane.xlu0 %32
    %34 = vmax.xlane.f32.xlu0 %v17
    %v35 = vpop.xlane.xlu0 %34
    %v36 = vsub.f32 %v12, %v25
    %v37 = vsub.f32 %v13, %v27
    %v38 = vsub.f32 %v14, %v29
    %v39 = vsub.f32 %v15, %v31
    %v40 = vsub.f32 %v16, %v33
    %v41 = vsub.f32 %v17, %v35
    %v42 = vmul.f32 %v36, 1.442695
    %v43 = vpow.pop %v42
    %v44 = vmul.f32 %v37, 1.442695
    %v45 = vpow.pop %v44
    %v46 = vmul.f32 %v38, 1.442695
    %v47 = vpow.pop %v46
    %v48 = vmul.f32 %v39, 1.442695
    %v49 = vpow.pop %v48
    %v50 = vmul.f32 %v40, 1.442695
    %v51 = vpow.pop %v50
    %v52 = vmul.f32 %v41, 1.442695
    %v53 = vpow.pop %v52
    %54 = vmatpush.msra.mxu0 1.0
    %55 = vmatpush.msra.mxu0 1.0
    %56 = vmatpush.msra.mxu0 1.0
    %57 = vmatpush.msra.mxu0 1.0
    %58 = vmatpush.msra.mxu0 1.0
    %59 = vmatpush.msra.mxu0 1.0
    %60 = vmatpush.msra.mxu0 1.0
    %61 = vmatpush.msra.mxu0 1.0
    %62 = vmatpush.msra.mxu0 1.0
    %63 = vmatpush.msra.mxu0 1.0
    %64 = vmatpush.msra.mxu0 1.0
    %65 = vmatpush.msra.mxu0 1.0
    %66 = vmatpush.msra.mxu0 1.0
    %67 = vmatpush.msra.mxu0 1.0
    %68 = vmatpush.msra.mxu0 1.0
    %69 = vmatpush.msra.mxu0 1.0
    %v70 = vand.u32 %v43, 4294901760
    %v71 = vsub.f32 %v43, %v70
    %v72 = vand.u32 %v71, 4294901760
    %v73 = vsub.f32 %v71, %v72
    %v74 = vand.u32 %v73, 4294901760
    %75 = vmatmul.f32.gmra.mxu0 %v74
    %v76 = vpop.f32.mrf.mxu0
    %v77 = vadd.f32 0.0, %v76
    %v78 = vand.u32 %v45, 4294901760
    %v79 = vsub.f32 %v45, %v78
    %v80 = vand.u32 %v79, 4294901760
    %v81 = vsub.f32 %v79, %v80
    %v82 = vand.u32 %v81, 4294901760
    %83 = vmatmul.f32.gmra.mxu0 %v82
    %v84 = vpop.f32.mrf.mxu0
    %v85 = vadd.f32 0.0, %v84
    %v86 = vand.u32 %v47, 4294901760
    %v87 = vsub.f32 %v47, %v86
    %v88 = vand.u32 %v87, 4294901760
    %v89 = vsub.f32 %v87, %v88
    %v90 = vand.u32 %v89, 4294901760
    %91 = vmatmul.f32.gmra.mxu0 %v90
    %v92 = vpop.f32.mrf.mxu0
    %v93 = vadd.f32 0.0, %v92
    %v94 = vand.u32 %v49, 4294901760
    %v95 = vsub.f32 %v49, %v94
    %v96 = vand.u32 %v95, 4294901760
    %v97 = vsub.f32 %v95, %v96
    %v98 = vand.u32 %v97, 4294901760
    %99 = vmatmul.f32.gmra.mxu0 %v98
    %v100 = vpop.f32.mrf.mxu0
    %v101 = vadd.f32 0.0, %v100
    %v102 = vand.u32 %v51, 4294901760
    %v103 = vsub.f32 %v51, %v102
    %v104 = vand.u32 %v103, 4294901760
    %v105 = vsub.f32 %v103, %v104
    %v106 = vand.u32 %v105, 4294901760
    %107 = vmatmul.f32.gmra.mxu0 %v106
    %v108 = vpop.f32.mrf.mxu0
    %v109 = vadd.f32 0.0, %v108
    %v110 = vand.u32 %v53, 4294901760
    %v111 = vsub.f32 %v53, %v110
    %v112 = vand.u32 %v111, 4294901760
    %v113 = vsub.f32 %v111, %v112
    %v114 = vand.u32 %v113, 4294901760
    %115 = vmatmul.f32.gmra.mxu0 %v114
    %v116 = vpop.f32.mrf.mxu0
    %v117 = vadd.f32 0.0, %v116
    %118 = vdwg.mxu0
    %119 = vmatpush.msra.mxu0 0.0
    %120 = vmatpush.msra.mxu0 0.0
    %121 = vmatpush.msra.mxu0 0.0
    %122 = vmatpush.msra.mxu0 0.0
    %123 = vmatpush.msra.mxu0 0.0
    %124 = vmatpush.msra.mxu0 0.0
    %125 = vmatpush.msra.mxu0 0.0
    %126 = vmatpush.msra.mxu0 0.0
    %127 = vmatpush.msra.mxu0 0.0
    %128 = vmatpush.msra.mxu0 0.0
    %129 = vmatpush.msra.mxu0 0.0
    %130 = vmatpush.msra.mxu0 0.0
    %131 = vmatpush.msra.mxu0 0.0
    %132 = vmatpush.msra.mxu0 0.0
    %133 = vmatpush.msra.mxu0 0.0
    %134 = vmatpush.msra.mxu0 0.0
    %v135 = vand.u32 %v43, 4294901760
    %136 = vmatmul.f32.gmra.mxu0 %v135
    %v137 = vpop.f32.mrf.mxu0
    %v138 = vadd.f32 %v77, %v137
    %v139 = vand.u32 %v45, 4294901760
    %140 = vmatmul.f32.gmra.mxu0 %v139
    %v141 = vpop.f32.mrf.mxu0
    %v142 = vadd.f32 %v85, %v141
    %v143 = vand.u32 %v47, 4294901760
    %144 = vmatmul.f32.gmra.mxu0 %v143
    %v145 = vpop.f32.mrf.mxu0
    %v146 = vadd.f32 %v93, %v145
    %v147 = vand.u32 %v49, 4294901760
    %148 = vmatmul.f32.gmra.mxu0 %v147
    %v149 = vpop.f32.mrf.mxu0
    %v150 = vadd.f32 %v101, %v149
    %v151 = vand.u32 %v51, 4294901760
    %152 = vmatmul.f32.gmra.mxu0 %v151
    %v153 = vpop.f32.mrf.mxu0
    %v154 = vadd.f32 %v109, %v153
    %v155 = vand.u32 %v53, 4294901760
    %156 = vmatmul.f32.gmra.mxu0 %v155
    %v157 = vpop.f32.mrf.mxu0
    %v158 = vadd.f32 %v117, %v157
    %159 = vdwg.mxu0
    %160 = vmatpush.msra.mxu0 0.0
    %161 = vmatpush.msra.mxu0 0.0
    %162 = vmatpush.msra.mxu0 0.0
    %163 = vmatpush.msra.mxu0 0.0
    %164 = vmatpush.msra.mxu0 0.0
    %165 = vmatpush.msra.mxu0 0.0
    %166 = vmatpush.msra.mxu0 0.0
    %167 = vmatpush.msra.mxu0 0.0
    %168 = vmatpush.msra.mxu0 0.0
    %169 = vmatpush.msra.mxu0 0.0
    %170 = vmatpush.msra.mxu0 0.0
    %171 = vmatpush.msra.mxu0 0.0
    %172 = vmatpush.msra.mxu0 0.0
    %173 = vmatpush.msra.mxu0 0.0
    %174 = vmatpush.msra.mxu0 0.0
    %175 = vmatpush.msra.mxu0 0.0
    %v176 = vand.u32 %v43, 4294901760
    %v177 = vsub.f32 %v43, %v176
    %178 = vmatmul.f32.gmra.mxu0 %v177
    %v179 = vpop.f32.mrf.mxu0
    %v180 = vadd.f32 %v138, %v179
    %v181 = vand.u32 %v45, 4294901760
    %v182 = vsub.f32 %v45, %v181
    %183 = vmatmul.f32.gmra.mxu0 %v182
    %v184 = vpop.f32.mrf.mxu0
    %v185 = vadd.f32 %v142, %v184
    %v186 = vand.u32 %v47, 4294901760
    %v187 = vsub.f32 %v47, %v186
    %188 = vmatmul.f32.gmra.mxu0 %v187
    %v189 = vpop.f32.mrf.mxu0
    %v190 = vadd.f32 %v146, %v189
    %v191 = vand.u32 %v49, 4294901760
    %v192 = vsub.f32 %v49, %v191
    %193 = vmatmul.f32.gmra.mxu0 %v192
    %v194 = vpop.f32.mrf.mxu0
    %v195 = vadd.f32 %v150, %v194
    %v196 = vand.u32 %v51, 4294901760
    %v197 = vsub.f32 %v51, %v196
    %198 = vmatmul.f32.gmra.mxu0 %v197
    %v199 = vpop.f32.mrf.mxu0
    %v200 = vadd.f32 %v154, %v199
    %v201 = vand.u32 %v53, 4294901760
    %v202 = vsub.f32 %v53, %v201
    %203 = vmatmul.f32.gmra.mxu0 %v202
    %v204 = vpop.f32.mrf.mxu0
    %v205 = vadd.f32 %v158, %v204
    %206 = vdwg.mxu0
    %207 = vmatpush.msra.mxu0 1.0
    %208 = vmatpush.msra.mxu0 1.0
    %209 = vmatpush.msra.mxu0 1.0
    %210 = vmatpush.msra.mxu0 1.0
    %211 = vmatpush.msra.mxu0 1.0
    %212 = vmatpush.msra.mxu0 1.0
    %213 = vmatpush.msra.mxu0 1.0
    %214 = vmatpush.msra.mxu0 1.0
    %215 = vmatpush.msra.mxu0 1.0
    %216 = vmatpush.msra.mxu0 1.0
    %217 = vmatpush.msra.mxu0 1.0
    %218 = vmatpush.msra.mxu0 1.0
    %219 = vmatpush.msra.mxu0 1.0
    %220 = vmatpush.msra.mxu0 1.0
    %221 = vmatpush.msra.mxu0 1.0
    %222 = vmatpush.msra.mxu0 1.0
    %v223 = vand.u32 %v43, 4294901760
    %v224 = vsub.f32 %v43, %v223
    %v225 = vand.u32 %v224, 4294901760
    %226 = vmatmul.f32.gmra.mxu0 %v225
    %v227 = vpop.f32.mrf.mxu0
    %v228 = vadd.f32 %v180, %v227
    %v229 = vand.u32 %v45, 4294901760
    %v230 = vsub.f32 %v45, %v229
    %v231 = vand.u32 %v230, 4294901760
    %232 = vmatmul.f32.gmra.mxu0 %v231
    %v233 = vpop.f32.mrf.mxu0
    %v234 = vadd.f32 %v185, %v233
    %v235 = vand.u32 %v47, 4294901760
    %v236 = vsub.f32 %v47, %v235
    %v237 = vand.u32 %v236, 4294901760
    %238 = vmatmul.f32.gmra.mxu0 %v237
    %v239 = vpop.f32.mrf.mxu0
    %v240 = vadd.f32 %v190, %v239
    %v241 = vand.u32 %v49, 4294901760
    %v242 = vsub.f32 %v49, %v241
    %v243 = vand.u32 %v242, 4294901760
    %244 = vmatmul.f32.gmra.mxu0 %v243
    %v245 = vpop.f32.mrf.mxu0
    %v246 = vadd.f32 %v195, %v245
    %v247 = vand.u32 %v51, 4294901760
    %v248 = vsub.f32 %v51, %v247
    %v249 = vand.u32 %v248, 4294901760
    %250 = vmatmul.f32.gmra.mxu0 %v249
    %v251 = vpop.f32.mrf.mxu0
    %v252 = vadd.f32 %v200, %v251
    %v253 = vand.u32 %v53, 4294901760
    %v254 = vsub.f32 %v53, %v253
    %v255 = vand.u32 %v254, 4294901760
    %256 = vmatmul.f32.gmra.mxu0 %v255
    %v257 = vpop.f32.mrf.mxu0
    %v258 = vadd.f32 %v205, %v257
    %259 = vdwg.mxu0
    %260 = vmatpush.msra.mxu0 0.0
    %261 = vmatpush.msra.mxu0 0.0
    %262 = vmatpush.msra.mxu0 0.0
    %263 = vmatpush.msra.mxu0 0.0
    %264 = vmatpush.msra.mxu0 0.0
    %265 = vmatpush.msra.mxu0 0.0
    %266 = vmatpush.msra.mxu0 0.0
    %267 = vmatpush.msra.mxu0 0.0
    %268 = vmatpush.msra.mxu0 0.0
    %269 = vmatpush.msra.mxu0 0.0
    %270 = vmatpush.msra.mxu0 0.0
    %271 = vmatpush.msra.mxu0 0.0
    %272 = vmatpush.msra.mxu0 0.0
    %273 = vmatpush.msra.mxu0 0.0
    %274 = vmatpush.msra.mxu0 0.0
    %275 = vmatpush.msra.mxu0 0.0
    %v276 = vand.u32 %v43, 4294901760
    %277 = vmatmul.f32.gmra.mxu0 %v276
    %v278 = vpop.f32.mrf.mxu0
    %v279 = vadd.f32 %v228, %v278
    %v280 = vand.u32 %v45, 4294901760
    %281 = vmatmul.f32.gmra.mxu0 %v280
    %v282 = vpop.f32.mrf.mxu0
    %v283 = vadd.f32 %v234, %v282
    %v284 = vand.u32 %v47, 4294901760
    %285 = vmatmul.f32.gmra.mxu0 %v284
    %v286 = vpop.f32.mrf.mxu0
    %v287 = vadd.f32 %v240, %v286
    %v288 = vand.u32 %v49, 4294901760
    %289 = vmatmul.f32.gmra.mxu0 %v288
    %v290 = vpop.f32.mrf.mxu0
    %v291 = vadd.f32 %v246, %v290
    %v292 = vand.u32 %v51, 4294901760
    %293 = vmatmul.f32.gmra.mxu0 %v292
    %v294 = vpop.f32.mrf.mxu0
    %v295 = vadd.f32 %v252, %v294
    %v296 = vand.u32 %v53, 4294901760
    %297 = vmatmul.f32.gmra.mxu0 %v296
    %v298 = vpop.f32.mrf.mxu0
    %v299 = vadd.f32 %v258, %v298
    %300 = vdwg.mxu0
    %301 = vmatpush.msra.mxu0 1.0
    %302 = vmatpush.msra.mxu0 1.0
    %303 = vmatpush.msra.mxu0 1.0
    %304 = vmatpush.msra.mxu0 1.0
    %305 = vmatpush.msra.mxu0 1.0
    %306 = vmatpush.msra.mxu0 1.0
    %307 = vmatpush.msra.mxu0 1.0
    %308 = vmatpush.msra.mxu0 1.0
    %309 = vmatpush.msra.mxu0 1.0
    %310 = vmatpush.msra.mxu0 1.0
    %311 = vmatpush.msra.mxu0 1.0
    %312 = vmatpush.msra.mxu0 1.0
    %313 = vmatpush.msra.mxu0 1.0
    %314 = vmatpush.msra.mxu0 1.0
    %315 = vmatpush.msra.mxu0 1.0
    %316 = vmatpush.msra.mxu0 1.0
    %v317 = vand.u32 %v43, 4294901760
    %318 = vmatmul.f32.gmra.mxu0 %v317
    %v319 = vpop.f32.mrf.mxu0
    %v320 = vadd.f32 %v279, %v319
    %v321 = vand.u32 %v45, 4294901760
    %322 = vmatmul.f32.gmra.mxu0 %v321
    %v323 = vpop.f32.mrf.mxu0
    %v324 = vadd.f32 %v283, %v323
    %v325 = vand.u32 %v47, 4294901760
    %326 = vmatmul.f32.gmra.mxu0 %v325
    %v327 = vpop.f32.mrf.mxu0
    %v328 = vadd.f32 %v287, %v327
    %v329 = vand.u32 %v49, 4294901760
    %330 = vmatmul.f32.gmra.mxu0 %v329
    %v331 = vpop.f32.mrf.mxu0
    %v332 = vadd.f32 %v291, %v331
    %v333 = vand.u32 %v51, 4294901760
    %334 = vmatmul.f32.gmra.mxu0 %v333
    %v335 = vpop.f32.mrf.mxu0
    %v336 = vadd.f32 %v295, %v335
    %v337 = vand.u32 %v53, 4294901760
    %338 = vmatmul.f32.gmra.mxu0 %v337
    %v339 = vpop.f32.mrf.mxu0
    %v340 = vadd.f32 %v299, %v339
    %341 = vdwg.mxu0
    %v342 = vlog2.pop %v320
    %v343 = vmul.f32 %v342, 0.6931472
    %v344 = vlog2.pop %v324
    %v345 = vmul.f32 %v344, 0.6931472
    %v346 = vlog2.pop %v328
    %v347 = vmul.f32 %v346, 0.6931472
    %v348 = vlog2.pop %v332
    %v349 = vmul.f32 %v348, 0.6931472
    %v350 = vlog2.pop %v336
    %v351 = vmul.f32 %v350, 0.6931472
    %v352 = vlog2.pop %v340
    %v353 = vmul.f32 %v352, 0.6931472
    %v354 = vlaneseq
    %v355 = vand.u32 %v354, 127
    %356 = vset.pattern.permute.xlu0 0
    %357 = vperm.xlu0 %356, %v18
    %v358 = vpop.permute.xlu0 %357
    %359 = vset.pattern.permute.xlu0 0
    %360 = vperm.xlu0 %359, %v19
    %v361 = vpop.permute.xlu0 %360
    %362 = vset.pattern.permute.xlu0 0
    %363 = vperm.xlu0 %362, %v20
    %v364 = vpop.permute.xlu0 %363
    %365 = vset.pattern.permute.xlu0 0
    %366 = vperm.xlu0 %365, %v21
    %v367 = vpop.permute.xlu0 %366
    %368 = vset.pattern.permute.xlu0 0
    %369 = vperm.xlu0 %368, %v22
    %v370 = vpop.permute.xlu0 %369
    %371 = vset.pattern.permute.xlu0 0
    %372 = vperm.xlu0 %371, %v23
    %v373 = vpop.permute.xlu0 %372
    %vm374 = vcmp.eq.s32.totalorder %v355, %v358
    %vm375 = vcmp.eq.s32.totalorder %v355, %v361
    %vm376 = vcmp.eq.s32.totalorder %v355, %v364
    %vm377 = vcmp.eq.s32.totalorder %v355, %v367
    %vm378 = vcmp.eq.s32.totalorder %v355, %v370
    %vm379 = vcmp.eq.s32.totalorder %v355, %v373
    %v380 = vsel %vm374, 0.9, 0.0007874016
    %v381 = vsel %vm375, 0.9, 0.0007874016
    %v382 = vsel %vm376, 0.9, 0.0007874016
    %v383 = vsel %vm377, 0.9, 0.0007874016
    %v384 = vsel %vm378, 0.9, 0.0007874016
    %v385 = vsel %vm379, 0.9, 0.0007874016
    %v386 = vmul.f32 %v380, %v36
    %v387 = vmul.f32 %v381, %v37
    %v388 = vmul.f32 %v382, %v38
    %v389 = vmul.f32 %v383, %v39
    %v390 = vmul.f32 %v384, %v40
    %v391 = vmul.f32 %v385, %v41
    %392 = vmatpush.msra.mxu0 1.0
    %393 = vmatpush.msra.mxu0 1.0
    %394 = vmatpush.msra.mxu0 1.0
    %395 = vmatpush.msra.mxu0 1.0
    %396 = vmatpush.msra.mxu0 1.0
    %397 = vmatpush.msra.mxu0 1.0
    %398 = vmatpush.msra.mxu0 1.0
    %399 = vmatpush.msra.mxu0 1.0
    %400 = vmatpush.msra.mxu0 1.0
    %401 = vmatpush.msra.mxu0 1.0
    %402 = vmatpush.msra.mxu0 1.0
    %403 = vmatpush.msra.mxu0 1.0
    %404 = vmatpush.msra.mxu0 1.0
    %405 = vmatpush.msra.mxu0 1.0
    %406 = vmatpush.msra.mxu0 1.0
    %407 = vmatpush.msra.mxu0 1.0
    %v408 = vand.u32 %v386, 4294901760
    %v409 = vsub.f32 %v386, %v408
    %v410 = vand.u32 %v409, 4294901760
    %v411 = vsub.f32 %v409, %v410
    %v412 = vand.u32 %v411, 4294901760
    %413 = vmatmul.f32.gmra.mxu0 %v412
    %v414 = vpop.f32.mrf.mxu0
    %v415 = vadd.f32 0.0, %v414
    %v416 = vand.u32 %v387, 4294901760
    %v417 = vsub.f32 %v387, %v416
    %v418 = vand.u32 %v417, 4294901760
    %v419 = vsub.f32 %v417, %v418
    %v420 = vand.u32 %v419, 4294901760
    %421 = vmatmul.f32.gmra.mxu0 %v420
    %v422 = vpop.f32.mrf.mxu0
    %v423 = vadd.f32 0.0, %v422
    %v424 = vand.u32 %v388, 4294901760
    %v425 = vsub.f32 %v388, %v424
    %v426 = vand.u32 %v425, 4294901760
    %v427 = vsub.f32 %v425, %v426
    %v428 = vand.u32 %v427, 4294901760
    %429 = vmatmul.f32.gmra.mxu0 %v428
    %v430 = vpop.f32.mrf.mxu0
    %v431 = vadd.f32 0.0, %v430
    %v432 = vand.u32 %v389, 4294901760
    %v433 = vsub.f32 %v389, %v432
    %v434 = vand.u32 %v433, 4294901760
    %v435 = vsub.f32 %v433, %v434
    %v436 = vand.u32 %v435, 4294901760
    %437 = vmatmul.f32.gmra.mxu0 %v436
    %v438 = vpop.f32.mrf.mxu0
    %v439 = vadd.f32 0.0, %v438
    %v440 = vand.u32 %v390, 4294901760
    %v441 = vsub.f32 %v390, %v440
    %v442 = vand.u32 %v441, 4294901760
    %v443 = vsub.f32 %v441, %v442
    %v444 = vand.u32 %v443, 4294901760
    %445 = vmatmul.f32.gmra.mxu0 %v444
    %v446 = vpop.f32.mrf.mxu0
    %v447 = vadd.f32 0.0, %v446
    %v448 = vand.u32 %v391, 4294901760
    %v449 = vsub.f32 %v391, %v448
    %v450 = vand.u32 %v449, 4294901760
    %v451 = vsub.f32 %v449, %v450
    %v452 = vand.u32 %v451, 4294901760
    %453 = vmatmul.f32.gmra.mxu0 %v452
    %v454 = vpop.f32.mrf.mxu0
    %v455 = vadd.f32 0.0, %v454
    %456 = vdwg.mxu0
    %457 = vmatpush.msra.mxu0 0.0
    %458 = vmatpush.msra.mxu0 0.0
    %459 = vmatpush.msra.mxu0 0.0
    %460 = vmatpush.msra.mxu0 0.0
    %461 = vmatpush.msra.mxu0 0.0
    %462 = vmatpush.msra.mxu0 0.0
    %463 = vmatpush.msra.mxu0 0.0
    %464 = vmatpush.msra.mxu0 0.0
    %465 = vmatpush.msra.mxu0 0.0
    %466 = vmatpush.msra.mxu0 0.0
    %467 = vmatpush.msra.mxu0 0.0
    %468 = vmatpush.msra.mxu0 0.0
    %469 = vmatpush.msra.mxu0 0.0
    %470 = vmatpush.msra.mxu0 0.0
    %471 = vmatpush.msra.mxu0 0.0
    %472 = vmatpush.msra.mxu0 0.0
    %v473 = vand.u32 %v386, 4294901760
    %474 = vmatmul.f32.gmra.mxu0 %v473
    %v475 = vpop.f32.mrf.mxu0
    %v476 = vadd.f32 %v415, %v475
    %v477 = vand.u32 %v387, 4294901760
    %478 = vmatmul.f32.gmra.mxu0 %v477
    %v479 = vpop.f32.mrf.mxu0
    %v480 = vadd.f32 %v423, %v479
    %v481 = vand.u32 %v388, 4294901760
    %482 = vmatmul.f32.gmra.mxu0 %v481
    %v483 = vpop.f32.mrf.mxu0
    %v484 = vadd.f32 %v431, %v483
    %v485 = vand.u32 %v389, 4294901760
    %486 = vmatmul.f32.gmra.mxu0 %v485
    %v487 = vpop.f32.mrf.mxu0
    %v488 = vadd.f32 %v439, %v487
    %v489 = vand.u32 %v390, 4294901760
    %490 = vmatmul.f32.gmra.mxu0 %v489
    %v491 = vpop.f32.mrf.mxu0
    %v492 = vadd.f32 %v447, %v491
    %v493 = vand.u32 %v391, 4294901760
    %494 = vmatmul.f32.gmra.mxu0 %v493
    %v495 = vpop.f32.mrf.mxu0
    %v496 = vadd.f32 %v455, %v495
    %497 = vdwg.mxu0
    %498 = vmatpush.msra.mxu0 0.0
    %499 = vmatpush.msra.mxu0 0.0
    %500 = vmatpush.msra.mxu0 0.0
    %501 = vmatpush.msra.mxu0 0.0
    %502 = vmatpush.msra.mxu0 0.0
    %503 = vmatpush.msra.mxu0 0.0
    %504 = vmatpush.msra.mxu0 0.0
    %505 = vmatpush.msra.mxu0 0.0
    %506 = vmatpush.msra.mxu0 0.0
    %507 = vmatpush.msra.mxu0 0.0
    %508 = vmatpush.msra.mxu0 0.0
    %509 = vmatpush.msra.mxu0 0.0
    %510 = vmatpush.msra.mxu0 0.0
    %511 = vmatpush.msra.mxu0 0.0
    %512 = vmatpush.msra.mxu0 0.0
    %513 = vmatpush.msra.mxu0 0.0
    %v514 = vand.u32 %v386, 4294901760
    %v515 = vsub.f32 %v386, %v514
    %516 = vmatmul.f32.gmra.mxu0 %v515
    %v517 = vpop.f32.mrf.mxu0
    %v518 = vadd.f32 %v476, %v517
    %v519 = vand.u32 %v387, 4294901760
    %v520 = vsub.f32 %v387, %v519
    %521 = vmatmul.f32.gmra.mxu0 %v520
    %v522 = vpop.f32.mrf.mxu0
    %v523 = vadd.f32 %v480, %v522
    %v524 = vand.u32 %v388, 4294901760
    %v525 = vsub.f32 %v388, %v524
    %526 = vmatmul.f32.gmra.mxu0 %v525
    %v527 = vpop.f32.mrf.mxu0
    %v528 = vadd.f32 %v484, %v527
    %v529 = vand.u32 %v389, 4294901760
    %v530 = vsub.f32 %v389, %v529
    %531 = vmatmul.f32.gmra.mxu0 %v530
    %v532 = vpop.f32.mrf.mxu0
    %v533 = vadd.f32 %v488, %v532
    %v534 = vand.u32 %v390, 4294901760
    %v535 = vsub.f32 %v390, %v534
    %536 = vmatmul.f32.gmra.mxu0 %v535
    %v537 = vpop.f32.mrf.mxu0
    %v538 = vadd.f32 %v492, %v537
    %v539 = vand.u32 %v391, 4294901760
    %v540 = vsub.f32 %v391, %v539
    %541 = vmatmul.f32.gmra.mxu0 %v540
    %v542 = vpop.f32.mrf.mxu0
    %v543 = vadd.f32 %v496, %v542
    %544 = vdwg.mxu0
    %545 = vmatpush.msra.mxu0 1.0
    %546 = vmatpush.msra.mxu0 1.0
    %547 = vmatpush.msra.mxu0 1.0
    %548 = vmatpush.msra.mxu0 1.0
    %549 = vmatpush.msra.mxu0 1.0
    %550 = vmatpush.msra.mxu0 1.0
    %551 = vmatpush.msra.mxu0 1.0
    %552 = vmatpush.msra.mxu0 1.0
    %553 = vmatpush.msra.mxu0 1.0
    %554 = vmatpush.msra.mxu0 1.0
    %555 = vmatpush.msra.mxu0 1.0
    %556 = vmatpush.msra.mxu0 1.0
    %557 = vmatpush.msra.mxu0 1.0
    %558 = vmatpush.msra.mxu0 1.0
    %559 = vmatpush.msra.mxu0 1.0
    %560 = vmatpush.msra.mxu0 1.0
    %v561 = vand.u32 %v386, 4294901760
    %v562 = vsub.f32 %v386, %v561
    %v563 = vand.u32 %v562, 4294901760
    %564 = vmatmul.f32.gmra.mxu0 %v563
    %v565 = vpop.f32.mrf.mxu0
    %v566 = vadd.f32 %v518, %v565
    %v567 = vand.u32 %v387, 4294901760
    %v568 = vsub.f32 %v387, %v567
    %v569 = vand.u32 %v568, 4294901760
    %570 = vmatmul.f32.gmra.mxu0 %v569
    %v571 = vpop.f32.mrf.mxu0
    %v572 = vadd.f32 %v523, %v571
    %v573 = vand.u32 %v388, 4294901760
    %v574 = vsub.f32 %v388, %v573
    %v575 = vand.u32 %v574, 4294901760
    %576 = vmatmul.f32.gmra.mxu0 %v575
    %v577 = vpop.f32.mrf.mxu0
    %v578 = vadd.f32 %v528, %v577
    %v579 = vand.u32 %v389, 4294901760
    %v580 = vsub.f32 %v389, %v579
    %v581 = vand.u32 %v580, 4294901760
    %582 = vmatmul.f32.gmra.mxu0 %v581
    %v583 = vpop.f32.mrf.mxu0
    %v584 = vadd.f32 %v533, %v583
    %v585 = vand.u32 %v390, 4294901760
    %v586 = vsub.f32 %v390, %v585
    %v587 = vand.u32 %v586, 4294901760
    %588 = vmatmul.f32.gmra.mxu0 %v587
    %v589 = vpop.f32.mrf.mxu0
    %v590 = vadd.f32 %v538, %v589
    %v591 = vand.u32 %v391, 4294901760
    %v592 = vsub.f32 %v391, %v591
    %v593 = vand.u32 %v592, 4294901760
    %594 = vmatmul.f32.gmra.mxu0 %v593
    %v595 = vpop.f32.mrf.mxu0
    %v596 = vadd.f32 %v543, %v595
    %597 = vdwg.mxu0
    %598 = vmatpush.msra.mxu0 0.0
    %599 = vmatpush.msra.mxu0 0.0
    %600 = vmatpush.msra.mxu0 0.0
    %601 = vmatpush.msra.mxu0 0.0
    %602 = vmatpush.msra.mxu0 0.0
    %603 = vmatpush.msra.mxu0 0.0
    %604 = vmatpush.msra.mxu0 0.0
    %605 = vmatpush.msra.mxu0 0.0
    %606 = vmatpush.msra.mxu0 0.0
    %607 = vmatpush.msra.mxu0 0.0
    %608 = vmatpush.msra.mxu0 0.0
    %609 = vmatpush.msra.mxu0 0.0
    %610 = vmatpush.msra.mxu0 0.0
    %611 = vmatpush.msra.mxu0 0.0
    %612 = vmatpush.msra.mxu0 0.0
    %613 = vmatpush.msra.mxu0 0.0
    %v614 = vand.u32 %v386, 4294901760
    %615 = vmatmul.f32.gmra.mxu0 %v614
    %v616 = vpop.f32.mrf.mxu0
    %v617 = vadd.f32 %v566, %v616
    %v618 = vand.u32 %v387, 4294901760
    %619 = vmatmul.f32.gmra.mxu0 %v618
    %v620 = vpop.f32.mrf.mxu0
    %v621 = vadd.f32 %v572, %v620
    %v622 = vand.u32 %v388, 4294901760
    %623 = vmatmul.f32.gmra.mxu0 %v622
    %v624 = vpop.f32.mrf.mxu0
    %v625 = vadd.f32 %v578, %v624
    %v626 = vand.u32 %v389, 4294901760
    %627 = vmatmul.f32.gmra.mxu0 %v626
    %v628 = vpop.f32.mrf.mxu0
    %v629 = vadd.f32 %v584, %v628
    %v630 = vand.u32 %v390, 4294901760
    %631 = vmatmul.f32.gmra.mxu0 %v630
    %v632 = vpop.f32.mrf.mxu0
    %v633 = vadd.f32 %v590, %v632
    %v634 = vand.u32 %v391, 4294901760
    %635 = vmatmul.f32.gmra.mxu0 %v634
    %v636 = vpop.f32.mrf.mxu0
    %v637 = vadd.f32 %v596, %v636
    %638 = vdwg.mxu0
    %639 = vmatpush.msra.mxu0 1.0
    %640 = vmatpush.msra.mxu0 1.0
    %641 = vmatpush.msra.mxu0 1.0
    %642 = vmatpush.msra.mxu0 1.0
    %643 = vmatpush.msra.mxu0 1.0
    %644 = vmatpush.msra.mxu0 1.0
    %645 = vmatpush.msra.mxu0 1.0
    %646 = vmatpush.msra.mxu0 1.0
    %647 = vmatpush.msra.mxu0 1.0
    %648 = vmatpush.msra.mxu0 1.0
    %649 = vmatpush.msra.mxu0 1.0
    %650 = vmatpush.msra.mxu0 1.0
    %651 = vmatpush.msra.mxu0 1.0
    %652 = vmatpush.msra.mxu0 1.0
    %653 = vmatpush.msra.mxu0 1.0
    %654 = vmatpush.msra.mxu0 1.0
    %v655 = vand.u32 %v386, 4294901760
    %656 = vmatmul.f32.gmra.mxu0 %v655
    %v657 = vpop.f32.mrf.mxu0
    %v658 = vadd.f32 %v617, %v657
    %v659 = vand.u32 %v387, 4294901760
    %660 = vmatmul.f32.gmra.mxu0 %v659
    %v661 = vpop.f32.mrf.mxu0
    %v662 = vadd.f32 %v621, %v661
    %v663 = vand.u32 %v388, 4294901760
    %664 = vmatmul.f32.gmra.mxu0 %v663
    %v665 = vpop.f32.mrf.mxu0
    %v666 = vadd.f32 %v625, %v665
    %v667 = vand.u32 %v389, 4294901760
    %668 = vmatmul.f32.gmra.mxu0 %v667
    %v669 = vpop.f32.mrf.mxu0
    %v670 = vadd.f32 %v629, %v669
    %v671 = vand.u32 %v390, 4294901760
    %672 = vmatmul.f32.gmra.mxu0 %v671
    %v673 = vpop.f32.mrf.mxu0
    %v674 = vadd.f32 %v633, %v673
    %v675 = vand.u32 %v391, 4294901760
    %676 = vmatmul.f32.gmra.mxu0 %v675
    %v677 = vpop.f32.mrf.mxu0
    %v678 = vadd.f32 %v637, %v677
    %679 = vdwg.mxu0
    %v680 = vsub.f32 %v343, %v658
    %v681 = vsub.f32 %v345, %v662
    %v682 = vsub.f32 %v347, %v666
    %v683 = vsub.f32 %v349, %v670
    %v684 = vsub.f32 %v351, %v674
    %v685 = vsub.f32 %v353, %v678
    %vm686 = vcmp.ne.s32.totalorder %v18, 0
    %vm687 = vcmp.ne.s32.totalorder %v19, 0
    %vm688 = vcmp.ne.s32.totalorder %v20, 0
    %vm689 = vcmp.ne.s32.totalorder %v21, 0
    %vm690 = vcmp.ne.s32.totalorder %v22, 0
    %vm691 = vcmp.ne.s32.totalorder %v23, 0
    %v692 = vlaneseq
    %v693 = vshrl.u32 %v692, 7
    %v694 = vadd.s32 %v693, 8
    %v695 = vadd.s32 %v693, 16
    %v696 = vadd.s32 %v693, 24
    %v697 = vadd.s32 %v693, 32
    %v698 = vadd.s32 %v693, 40
    %s699 = smul.u32 0, 48
    %v700 = vstv %s699
    %v701 = vadd.s32 %v693, %v700
    %v702 = vadd.s32 %v694, %v700
    %v703 = vadd.s32 %v695, %v700
    %v704 = vadd.s32 %v696, %v700
    %v705 = vadd.s32 %v697, %v700
    %v706 = vadd.s32 %v698, %v700
    %vm707 = vcmp.lt.s32.totalorder %v701, 46
    %vm708 = vcmp.lt.s32.totalorder %v702, 46
    %vm709 = vcmp.lt.s32.totalorder %v703, 46
    %vm710 = vcmp.lt.s32.totalorder %v704, 46
    %vm711 = vcmp.lt.s32.totalorder %v705, 46
    %vm712 = vcmp.lt.s32.totalorder %v706, 46
    %vm713 = vmand %vm686, %vm707
    %vm714 = vmand %vm687, %vm708
    %vm715 = vmand %vm688, %vm709
    %vm716 = vmand %vm689, %vm710
    %vm717 = vmand %vm690, %vm711
    %vm718 = vmand %vm691, %vm712
    %v719 = vsel %vm713, %v680, 0.0
    %v720 = vsel %vm714, %v681, 0.0
    %v721 = vsel %vm715, %v682, 0.0
    %v722 = vsel %vm716, %v683, 0.0
    %v723 = vsel %vm717, %v684, 0.0
    %v724 = vsel %vm718, %v685, 0.0
    %vm725 = vcmask 7168
    %v726 = vsel %vm725, %v719, 0.0
    %v727 = vsel %vm725, %v720, 0.0
    %v728 = vadd.f32 %v726, %v727
    %v729 = vsel %vm725, %v721, 0.0
    %v730 = vadd.f32 %v728, %v729
    %v731 = vsel %vm725, %v722, 0.0
    %v732 = vadd.f32 %v730, %v731
    %v733 = vsel %vm725, %v723, 0.0
    %v734 = vadd.f32 %v732, %v733
    %v735 = vsel %vm725, %v724, 0.0
    %v736 = vadd.f32 %v734, %v735
    %v737 = vrot.slane %v736, 4
    %v738 = vadd.f32 %v736, %v737
    %v739 = vrot.slane %v738, 2
    %v740 = vadd.f32 %v738, %v739
    %v741 = vrot.slane %v740, 1
    %v742 = vadd.f32 %v740, %v741
    %v743 = vsel %vm713, 1.0, 0.0
    %v744 = vsel %vm714, 1.0, 0.0
    %v745 = vsel %vm715, 1.0, 0.0
    %v746 = vsel %vm716, 1.0, 0.0
    %v747 = vsel %vm717, 1.0, 0.0
    %v748 = vsel %vm718, 1.0, 0.0
    %v749 = vsel %vm725, %v743, 0.0
    %v750 = vsel %vm725, %v744, 0.0
    %v751 = vadd.f32 %v749, %v750
    %v752 = vsel %vm725, %v745, 0.0
    %v753 = vadd.f32 %v751, %v752
    %v754 = vsel %vm725, %v746, 0.0
    %v755 = vadd.f32 %v753, %v754
    %v756 = vsel %vm725, %v747, 0.0
    %v757 = vadd.f32 %v755, %v756
    %v758 = vsel %vm725, %v748, 0.0
    %v759 = vadd.f32 %v757, %v758
    %v760 = vrot.slane %v759, 4
    %v761 = vadd.f32 %v759, %v760
    %v762 = vrot.slane %v761, 2
    %v763 = vadd.f32 %v761, %v762
    %v764 = vrot.slane %v763, 1
    %v765 = vadd.f32 %v763, %v764
    %vm766 = vcmp.eq.s32.totalorder %v355, 0
    %vm767 = vcmp.eq.s32.totalorder %v355, 1
    %769 = vset.pattern.permute.xlu0 0
    %770 = vperm.xlu0 %769, %v765
    %v771 = vpop.permute.xlu0 %770
    %v773 = vsel %vm767, %v771, 0.0
    %775 = vset.pattern.permute.xlu0 0
    %776 = vperm.xlu0 %775, %v742
    %v777 = vpop.permute.xlu0 %776
    %v779 = vsel %vm766, %v777, %v773
    %780 = vst [vmem:[#allocation2] sm:$0x1] %v779
    // Predicated region
    $region10: #{tpu_custom_call.1} parent=1 // pred_check
      _
    $region11: #{tpu_custom_call.1} parent=1 // pred_check_branch
      %782 = sbr.rel (0) target = $region13
    $region12: #{tpu_custom_call.1} parent=1 // pred_region
      %784 = vsyncadd [#allocation3], 0
      %s786 = sshll.u32 [#allocation2], 4
      %s787 = int_to_ptr.vmem [resolvable:$true] %s786
      %s788 = sshll.u32 %s2, 4
      %s789 = int_to_ptr.hbm [resolvable:$true] %s788
      %791 = dma.vmem_to_hbm [thread:$0]  %s787, 16, %s789, [#allocation3]
    $region13: #{tpu_custom_call.1} parent=1 // pred_fallthru
      _
    // Predicated region
    $region14: #{tpu_custom_call.1} parent=1 // pred_check
      _
    $region15: #{tpu_custom_call.1} parent=1 // pred_check_branch
      %793 = sbr.rel (0) target = $region17
    $region16: #{tpu_custom_call.1} parent=1 // pred_region
      %795 = dma.done [#allocation3], 16
    $region17: #{tpu_custom_call.1} parent=1 // pred_fallthru
      _
    %796 = vsyncpa [#allocation3], 1

</llo_original>
